<compile_context>
chip_gen: v6e
topology: v6e:2x2x1
jax: 0.10.0
libtpu: 0.0.40
codegen_flags: <defaults>
</compile_context>

<pallas_src>
import functools

import jax
import jax.numpy as jnp
from jax.experimental import pallas as pl
from jax.experimental.pallas import tpu as pltpu

EPS = 1e-5
LANE = 128


def _round_up(a, b):
    return (a + b - 1) // b * b


def adapter_kernel(idx_ref, x_ref, g_ref, b_ref, dw_ref, db_ref, uw_ref, ub_ref,
                   o_ref):
    """One row-tile: layernorm -> down -> relu -> up -> residual."""
    del idx_ref  # consumed only by the BlockSpec index_maps (module selection)

    x = x_ref[...].astype(jnp.float32)                        # (rt, D)

    # One-pass LayerNorm statistics over the last dim (var = E[x^2] - mean^2).
    mean = jnp.mean(x, axis=-1, keepdims=True)
    var = jnp.mean(x * x, axis=-1, keepdims=True) - mean * mean
    xn = (x - mean) * jax.lax.rsqrt(var + EPS)
    xn = xn * g_ref[...].astype(jnp.float32) + b_ref[...].astype(jnp.float32)

    # Down projection: (rt, D) @ (D, Bn_pad), bias, ReLU. MXU accumulates f32.
    h = jnp.dot(xn.astype(dw_ref.dtype), dw_ref[...],
                preferred_element_type=jnp.float32)
    h = jnp.maximum(h + db_ref[...].astype(jnp.float32), 0.0)

    # Up projection: (rt, Bn_pad) @ (Bn_pad, D), bias, residual.
    u = jnp.dot(h.astype(uw_ref.dtype), uw_ref[...],
                preferred_element_type=jnp.float32)
    u = u + ub_ref[...].astype(jnp.float32)

    o_ref[...] = (u + x).astype(o_ref.dtype)


def prepare_adapter_params(params, input_size, bottleneck_size, *,
                           weight_dtype=None):
    """One-time (model-load) re-layout of the shared adapter parameters.

    Produces stacked, pre-transposed, lane-padded tensors so the hot forward
    path never slices/reshapes/transposes weights in HBM:
      down_w_t : (M, D, Bn_pad)   (x_norm @ down_w_t = down projection)
      up_w_t   : (M, Bn_pad, D)
      down_b   : (M, 1, Bn_pad)   (zero in the padded lanes)
      up_b     : (M, 1, D)
      ln_g/b   : (M, 1, D)
    Padding the bottleneck to a multiple of 128 keeps h lane-dense; the padded
    columns of down_w_t / rows of up_w_t / lanes of down_b are zero, so
    relu(0) = 0 contributes nothing and results are unchanged.
    """
    M = params["down_weight_w"].shape[0]
    D, bn = input_size, bottleneck_size
    bn_pad = _round_up(bn, LANE)

    dw = params["down_weight_w"].reshape(M, bn, D)      # torch row view (Bn, D)
    uw = params["up_weight_w"].reshape(M, D, bn)        # torch row view (D, Bn)
    down_w_t = jnp.transpose(dw, (0, 2, 1))             # (M, D, Bn)
    up_w_t = jnp.transpose(uw, (0, 2, 1))               # (M, Bn, D)

    down_w_t = jnp.pad(down_w_t, ((0, 0), (0, 0), (0, bn_pad - bn)))
    up_w_t = jnp.pad(up_w_t, ((0, 0), (0, bn_pad - bn), (0, 0)))
    down_b = jnp.pad(params["down_bias_w"],
                     ((0, 0), (0, bn_pad - bn))).reshape(M, 1, bn_pad)

    if weight_dtype is not None:                        # e.g. jnp.bfloat16
        down_w_t = down_w_t.astype(weight_dtype)
        up_w_t = up_w_t.astype(weight_dtype)

    return {
        "down_w_t": down_w_t,
        "up_w_t": up_w_t,
        "down_b": down_b,
        "up_b": params["up_bias_w"].reshape(M, 1, D),
        "ln_g": params["ln_gamma_w"].reshape(M, 1, D),
        "ln_b": params["ln_beta_w"].reshape(M, 1, D),
    }


def efficient_adapter_forward(x, prepared, index, *, row_tile=512,
                              vmem_limit_bytes=48 << 20):
    """x: (seq_len, batch, input_size). Returns the same shape/dtype.

    row_tile: rows of the flattened (seq*batch, D) slab per grid step.
      512 is a safe default on all generations (fits v7x's 64 MiB VMEM with
      headroom); sweep 512/1024 on v5e/v6e together with vmem_limit_bytes.
    """
    S, B, D = x.shape
    M, Dw, bn_pad = prepared["down_w_t"].shape
    assert Dw == D, "prepared params do not match input feature size"

    N = S * B
    rt = min(_round_up(max(row_tile, 8), 8), _round_up(N, 8))
    n_pad = _round_up(N, rt)

    x2d = x.reshape(N, D)
    if n_pad != N:
        # Zero rows are safe through LN (var=0 -> rsqrt(eps)), and are sliced off.
        x2d = jnp.pad(x2d, ((0, n_pad - N), (0, 0)))

    idx = jnp.asarray(index, dtype=jnp.int32).reshape((1,))

    # Module selection happens inside the index_maps via the scalar-prefetch
    # SMEM ref; these maps are grid-invariant, so each weight is DMA'd once.
    def wmap(i, idx_ref):
        return (idx_ref[0], 0, 0)

    out2d = pl.pallas_call(
        adapter_kernel,
        out_shape=jax.ShapeDtypeStruct((n_pad, D), x.dtype),
        grid_spec=pltpu.PrefetchScalarGridSpec(
            num_scalar_prefetch=1,
            grid=(n_pad // rt,),
            in_specs=[
                pl.BlockSpec((rt, D), lambda i, idx_ref: (i, 0)),       # x rows
                pl.BlockSpec((None, 1, D), wmap),                       # ln gamma
                pl.BlockSpec((None, 1, D), wmap),                       # ln beta
                pl.BlockSpec((None, D, bn_pad), wmap),                  # down W^T
                pl.BlockSpec((None, 1, bn_pad), wmap),                  # down bias
                pl.BlockSpec((None, bn_pad, D), wmap),                  # up W^T
                pl.BlockSpec((None, 1, D), wmap),                       # up bias
            ],
            out_specs=pl.BlockSpec((rt, D), lambda i, idx_ref: (i, 0)),
        ),
        compiler_params=pltpu.CompilerParams(
            # Parallel row axis: lets v7x's two TensorCores split the tiles.
            dimension_semantics=("parallel",),
            vmem_limit_bytes=vmem_limit_bytes,
        ),
    )(idx, x2d, prepared["ln_g"], prepared["ln_b"], prepared["down_w_t"],
      prepared["down_b"], prepared["up_w_t"], prepared["up_b"])

    if n_pad != N:
        out2d = out2d[:N]
    return out2d.reshape(S, B, D)


def init_params(key, num_modules, input_size, bottleneck_size):
    """Deterministic synthetic init mirroring EfficientAdapter.__init__ shapes."""
    k0, k1, k2 = jax.random.split(key, 3)
    bound = (6.0 / (input_size + bottleneck_size)) ** 0.5  # xavier_uniform bound
    # NOTE: torch zeroes up_weight rows at init; we keep xavier values so the
    # full hot path (both matmuls) is actually exercised.
    down_rows = jax.random.uniform(
        k0, (num_modules, bottleneck_size, input_size),
        minval=-bound, maxval=bound, dtype=jnp.float32)
    up_rows = jax.random.uniform(
        k1, (num_modules, input_size, bottleneck_size),
        minval=-bound, maxval=bound, dtype=jnp.float32)
    ub_bound = (6.0 / (input_size + num_modules)) ** 0.5
    up_bias = jax.random.uniform(
        k2, (num_modules, input_size),
        minval=-ub_bound, maxval=ub_bound, dtype=jnp.float32)
    return {
        "down_weight_w": down_rows.reshape(num_modules, -1),
        "up_weight_w": up_rows.reshape(num_modules, -1),
        "down_bias_w": jnp.zeros((num_modules, bottleneck_size), jnp.float32),
        "up_bias_w": up_bias,
        "ln_gamma_w": jnp.ones((num_modules, input_size), jnp.float32),
        "ln_beta_w": jnp.zeros((num_modules, input_size), jnp.float32),
    }


def reference_forward(x, params, index):
    """Pure-JAX reference reproducing the PyTorch forward."""
    D = x.shape[-1]
    bottleneck = params["down_bias_w"].shape[1]
    down_w = params["down_weight_w"][index].reshape(bottleneck, D)
    up_w = params["up_weight_w"][index].reshape(D, bottleneck)
    down_b = params["down_bias_w"][index]
    up_b = params["up_bias_w"][index]
    ln_g = params["ln_gamma_w"][index]
    ln_b = params["ln_beta_w"][index]

    shortcut = x
    mean = jnp.mean(x, axis=-1, keepdims=True)
    var = jnp.mean(jnp.square(x - mean), axis=-1, keepdims=True)
    h = (x - mean) / jnp.sqrt(var + EPS) * ln_g + ln_b
    h = h @ down_w.T + down_b
    h = jnp.maximum(h, 0.0)
    h = h @ up_w.T + up_b
    return h + shortcut


if __name__ == "__main__":
    num_modules = 3
    input_size = 32          # small demo; real configs keep D a multiple of 128
    bottleneck_size = 8      # padded to 128 lanes inside prepare_adapter_params

    key = jax.random.PRNGKey(0)
    kp, kx1, kx2 = jax.random.split(key, 3)
    params = init_params(kp, num_modules, input_size, bottleneck_size)
    prepared = prepare_adapter_params(params, input_size, bottleneck_size)

    # Case 1: tiny slab (single grid step), default row_tile clamps to N=16.
    x1 = jax.random.normal(kx1, (8, 2, input_size), dtype=jnp.float32)
    fwd = functools.partial(efficient_adapter_forward, prepared=prepared)
    out1 = jax.block_until_ready(fwd(x1, index=1))
    ref1 = reference_forward(x1, params, 1)
    assert out1.shape == x1.shape and out1.dtype == x1.dtype
    assert jnp.allclose(out1, ref1, atol=1e-4, rtol=1e-4), "mismatch (case 1)"

    # Case 2: multi-tile grid + row padding (N=120 rows, row_tile=32 -> grid=4).
    x2 = jax.random.normal(kx2, (40, 3, input_size), dtype=jnp.float32)
    out2 = jax.block_until_ready(fwd(x2, index=2, row_tile=32))
    ref2 = reference_forward(x2, params, 2)
    assert out2.shape == x2.shape and out2.dtype == x2.dtype
    assert jnp.allclose(out2, ref2, atol=1e-4, rtol=1e-4), "mismatch (case 2)"

    print("KERNEL_OK")
</pallas_src>

<mosaic_0001>
module attributes {stable_mosaic.version = 11 : i64} {
  func.func @adapter_kernel(%arg0: i32, %arg1: memref<1xi32, #tpu.memory_space<smem>>, %arg2: memref<16x32xf32, #tpu.memory_space<vmem>>, %arg3: memref<1x1x32xf32, #tpu.memory_space<vmem>>, %arg4: memref<1x1x32xf32, #tpu.memory_space<vmem>>, %arg5: memref<1x32x128xf32, #tpu.memory_space<vmem>>, %arg6: memref<1x1x128xf32, #tpu.memory_space<vmem>>, %arg7: memref<1x128x32xf32, #tpu.memory_space<vmem>>, %arg8: memref<1x1x32xf32, #tpu.memory_space<vmem>>, %arg9: memref<16x32xf32, #tpu.memory_space<vmem>>) attributes {dimension_semantics = [#tpu.dimension_semantics<parallel>], iteration_bounds = array<i64: 1>, scalar_prefetch = 1 : i64, scratch_operands = 0 : i64, tpu.core_type = #tpu.core_type<tc>, window_params = [{transform_indices = @transform_0, window_bounds = array<i64: 16, 32>}, {transform_indices = @transform_1, window_bounds = array<i64: 1, 1, 32>}, {transform_indices = @transform_2, window_bounds = array<i64: 1, 1, 32>}, {transform_indices = @transform_3, window_bounds = array<i64: 1, 32, 128>}, {transform_indices = @transform_4, window_bounds = array<i64: 1, 1, 128>}, {transform_indices = @transform_5, window_bounds = array<i64: 1, 128, 32>}, {transform_indices = @transform_6, window_bounds = array<i64: 1, 1, 32>}, {transform_indices = @transform_7, window_bounds = array<i64: 16, 32>}]} {
    %c0 = arith.constant 0 : index
    %c0_0 = arith.constant 0 : index
    %0 = vector.load %arg2[%c0, %c0_0] : memref<16x32xf32, #tpu.memory_space<vmem>>, vector<16x32xf32>
    %cst = arith.constant dense<0.000000e+00> : vector<16xf32>
    %1 = vector.multi_reduction <add>, %0, %cst [1] : vector<16x32xf32> to vector<16xf32>
    %2 = vector.shape_cast %1 : vector<16xf32> to vector<16x1xf32>
    %cst_1 = arith.constant 3.200000e+01 : f32
    %3 = vector.broadcast %cst_1 : f32 to vector<16x1xf32>
    %4 = arith.divf %2, %3 : vector<16x1xf32>
    %5 = arith.mulf %0, %0 : vector<16x32xf32>
    %cst_2 = arith.constant dense<0.000000e+00> : vector<16xf32>
    %6 = vector.multi_reduction <add>, %5, %cst_2 [1] : vector<16x32xf32> to vector<16xf32>
    %7 = vector.shape_cast %6 : vector<16xf32> to vector<16x1xf32>
    %cst_3 = arith.constant 3.200000e+01 : f32
    %8 = vector.broadcast %cst_3 : f32 to vector<16x1xf32>
    %9 = arith.divf %7, %8 : vector<16x1xf32>
    %10 = arith.mulf %4, %4 : vector<16x1xf32>
    %11 = arith.subf %9, %10 : vector<16x1xf32>
    %12 = vector.broadcast %4 : vector<16x1xf32> to vector<16x32xf32>
    %13 = arith.subf %0, %12 : vector<16x32xf32>
    %cst_4 = arith.constant 9.99999974E-6 : f32
    %14 = vector.broadcast %cst_4 : f32 to vector<16x1xf32>
    %15 = arith.addf %11, %14 : vector<16x1xf32>
    %16 = math.rsqrt %15 : vector<16x1xf32>
    %17 = vector.broadcast %16 : vector<16x1xf32> to vector<16x32xf32>
    %18 = arith.mulf %13, %17 : vector<16x32xf32>
    %c0_5 = arith.constant 0 : index
    %c0_6 = arith.constant 0 : index
    %c0_7 = arith.constant 0 : index
    %19 = vector.load %arg3[%c0_5, %c0_6, %c0_7] : memref<1x1x32xf32, #tpu.memory_space<vmem>>, vector<1x1x32xf32>
    %20 = vector.shape_cast %19 : vector<1x1x32xf32> to vector<1x32xf32>
    %21 = vector.broadcast %20 : vector<1x32xf32> to vector<16x32xf32>
    %22 = arith.mulf %18, %21 : vector<16x32xf32>
    %c0_8 = arith.constant 0 : index
    %c0_9 = arith.constant 0 : index
    %c0_10 = arith.constant 0 : index
    %23 = vector.load %arg4[%c0_8, %c0_9, %c0_10] : memref<1x1x32xf32, #tpu.memory_space<vmem>>, vector<1x1x32xf32>
    %24 = vector.shape_cast %23 : vector<1x1x32xf32> to vector<1x32xf32>
    %25 = vector.broadcast %24 : vector<1x32xf32> to vector<16x32xf32>
    %26 = arith.addf %22, %25 : vector<16x32xf32>
    %c0_11 = arith.constant 0 : index
    %c0_12 = arith.constant 0 : index
    %c0_13 = arith.constant 0 : index
    %27 = vector.load %arg5[%c0_11, %c0_12, %c0_13] : memref<1x32x128xf32, #tpu.memory_space<vmem>>, vector<1x32x128xf32>
    %28 = vector.shape_cast %27 : vector<1x32x128xf32> to vector<32x128xf32>
    %cst_14 = arith.constant dense<0.000000e+00> : vector<16x128xf32>
    %29 = tpu.matmul %26, %28, %cst_14 {dimension_numbers = #tpu.dot_dimension_numbers<[1], [0], [0], [1], [0, 0, 1, 1], [], []>} : vector<16x32xf32>, vector<32x128xf32>, vector<16x128xf32> -> vector<16x128xf32>
    %c0_15 = arith.constant 0 : index
    %c0_16 = arith.constant 0 : index
    %c0_17 = arith.constant 0 : index
    %30 = vector.load %arg6[%c0_15, %c0_16, %c0_17] : memref<1x1x128xf32, #tpu.memory_space<vmem>>, vector<1x1x128xf32>
    %31 = vector.shape_cast %30 : vector<1x1x128xf32> to vector<1x128xf32>
    %32 = vector.broadcast %31 : vector<1x128xf32> to vector<16x128xf32>
    %33 = arith.addf %29, %32 : vector<16x128xf32>
    %cst_18 = arith.constant 0.000000e+00 : f32
    %34 = vector.broadcast %cst_18 : f32 to vector<16x128xf32>
    %35 = arith.maximumf %33, %34 : vector<16x128xf32>
    %c0_19 = arith.constant 0 : index
    %c0_20 = arith.constant 0 : index
    %c0_21 = arith.constant 0 : index
    %36 = vector.load %arg7[%c0_19, %c0_20, %c0_21] : memref<1x128x32xf32, #tpu.memory_space<vmem>>, vector<1x128x32xf32>
    %37 = vector.shape_cast %36 : vector<1x128x32xf32> to vector<128x32xf32>
    %cst_22 = arith.constant dense<0.000000e+00> : vector<16x32xf32>
    %38 = tpu.matmul %35, %37, %cst_22 {dimension_numbers = #tpu.dot_dimension_numbers<[1], [0], [0], [1], [0, 0, 1, 1], [], []>} : vector<16x128xf32>, vector<128x32xf32>, vector<16x32xf32> -> vector<16x32xf32>
    %c0_23 = arith.constant 0 : index
    %c0_24 = arith.constant 0 : index
    %c0_25 = arith.constant 0 : index
    %39 = vector.load %arg8[%c0_23, %c0_24, %c0_25] : memref<1x1x32xf32, #tpu.memory_space<vmem>>, vector<1x1x32xf32>
    %40 = vector.shape_cast %39 : vector<1x1x32xf32> to vector<1x32xf32>
    %41 = vector.broadcast %40 : vector<1x32xf32> to vector<16x32xf32>
    %42 = arith.addf %38, %41 : vector<16x32xf32>
    %43 = arith.addf %42, %0 : vector<16x32xf32>
    %c0_26 = arith.constant 0 : index
    %c0_27 = arith.constant 0 : index
    %44 = vector.load %arg9[%c0_26, %c0_27] : memref<16x32xf32, #tpu.memory_space<vmem>>, vector<16x32xf32>
    tpu.vector_store %arg9[%c0_26, %c0_27], %43 {strides = array<i32>} : memref<16x32xf32, #tpu.memory_space<vmem>>, vector<16x32xf32>,
    return
  }
  func.func @transform_0(%arg0: i32, %arg1: memref<1xi32, #tpu.memory_space<smem>>) -> (i32, i32) {
    %c0_i32 = arith.constant 0 : i32
    %c0_i32_0 = arith.constant 0 : i32
    return %arg0, %c0_i32 : i32, i32
  }
  func.func @transform_1(%arg0: i32, %arg1: memref<1xi32, #tpu.memory_space<smem>>) -> (i32, i32, i32) {
    %c0 = arith.constant 0 : index
    %0 = memref.load %arg1[%c0] : memref<1xi32, #tpu.memory_space<smem>>
    %c0_i32 = arith.constant 0 : i32
    %c0_i32_0 = arith.constant 0 : i32
    %c0_i32_1 = arith.constant 0 : i32
    return %0, %c0_i32, %c0_i32_0 : i32, i32, i32
  }
  func.func @transform_2(%arg0: i32, %arg1: memref<1xi32, #tpu.memory_space<smem>>) -> (i32, i32, i32) {
    %c0 = arith.constant 0 : index
    %0 = memref.load %arg1[%c0] : memref<1xi32, #tpu.memory_space<smem>>
    %c0_i32 = arith.constant 0 : i32
    %c0_i32_0 = arith.constant 0 : i32
    %c0_i32_1 = arith.constant 0 : i32
    return %0, %c0_i32, %c0_i32_0 : i32, i32, i32
  }
  func.func @transform_3(%arg0: i32, %arg1: memref<1xi32, #tpu.memory_space<smem>>) -> (i32, i32, i32) {
    %c0 = arith.constant 0 : index
    %0 = memref.load %arg1[%c0] : memref<1xi32, #tpu.memory_space<smem>>
    %c0_i32 = arith.constant 0 : i32
    %c0_i32_0 = arith.constant 0 : i32
    %c0_i32_1 = arith.constant 0 : i32
    return %0, %c0_i32, %c0_i32_0 : i32, i32, i32
  }
  func.func @transform_4(%arg0: i32, %arg1: memref<1xi32, #tpu.memory_space<smem>>) -> (i32, i32, i32) {
    %c0 = arith.constant 0 : index
    %0 = memref.load %arg1[%c0] : memref<1xi32, #tpu.memory_space<smem>>
    %c0_i32 = arith.constant 0 : i32
    %c0_i32_0 = arith.constant 0 : i32
    %c0_i32_1 = arith.constant 0 : i32
    return %0, %c0_i32, %c0_i32_0 : i32, i32, i32
  }
  func.func @transform_5(%arg0: i32, %arg1: memref<1xi32, #tpu.memory_space<smem>>) -> (i32, i32, i32) {
    %c0 = arith.constant 0 : index
    %0 = memref.load %arg1[%c0] : memref<1xi32, #tpu.memory_space<smem>>
    %c0_i32 = arith.constant 0 : i32
    %c0_i32_0 = arith.constant 0 : i32
    %c0_i32_1 = arith.constant 0 : i32
    return %0, %c0_i32, %c0_i32_0 : i32, i32, i32
  }
  func.func @transform_6(%arg0: i32, %arg1: memref<1xi32, #tpu.memory_space<smem>>) -> (i32, i32, i32) {
    %c0 = arith.constant 0 : index
    %0 = memref.load %arg1[%c0] : memref<1xi32, #tpu.memory_space<smem>>
    %c0_i32 = arith.constant 0 : i32
    %c0_i32_0 = arith.constant 0 : i32
    %c0_i32_1 = arith.constant 0 : i32
    return %0, %c0_i32, %c0_i32_0 : i32, i32, i32
  }
  func.func @transform_7(%arg0: i32, %arg1: memref<1xi32, #tpu.memory_space<smem>>) -> (i32, i32) {
    %c0_i32 = arith.constant 0 : i32
    %c0_i32_0 = arith.constant 0 : i32
    return %arg0, %c0_i32 : i32, i32
  }
}

</mosaic_0001>

<llo_original>
// kernel: tpu_custom_call.1
$region0: #{tpu_custom_call.1}
  #allocation0 [shape = 'u32[]', space=smem, size = 0x4, offset = 0x4, fixed_abs, tag = 'smem constant byte address 0x4 - core index']
  #allocation1 [shape = 'u32[144,128]{1,0:T(1,128)}', space=vmem, size = 0x12000, scoped, tag = 'internal scratch']
  #allocation2 [shape = 's32[1]{0}', space=sflag, size = 0x4, scoped, tag = 'scoped memory for tpu_custom_call.1']
  #allocation3 [shape = 's32[1]{0:T(128)S(6)}', space=smem, size = 0x200, scoped, tag = 'prefetched SMEM operand 0']
  %s0 = inlined_call_operand.<no memory space> [shape: s32[1], index: 0, kind: input, shape index: {}]
  %s1 = inlined_call_operand.vmem [shape: f32[16,32], index: 1, kind: input, shape index: {}]
  %s2 = inlined_call_operand.vmem [shape: f32[3,1,32], index: 2, kind: input, shape index: {}]
  %s3 = inlined_call_operand.vmem [shape: f32[3,1,32], index: 3, kind: input, shape index: {}]
  %s4 = inlined_call_operand.vmem [shape: f32[3,32,128], index: 4, kind: input, shape index: {}]
  %s5 = inlined_call_operand.vmem [shape: f32[3,1,128], index: 5, kind: input, shape index: {}]
  %s6 = inlined_call_operand.vmem [shape: f32[3,128,32], index: 6, kind: input, shape index: {}]
  %s7 = inlined_call_operand.vmem [shape: f32[3,1,32], index: 7, kind: input, shape index: {}]
  %s8 = inlined_call_operand.hbm [shape: f32[16,32], index: 8, kind: output, shape index: {}]
  %s9 = sld [smem:[#allocation0]]
  $region38: #{tpu_custom_call.1} parent=0
    _
  %s11 = ssub.s32 1, %s9
  %s12 = scalar_select 0, %s11, %s9
  %13 = sst [smem:[#allocation3]] %s0
  $region1: #{tpu_custom_call.1} parent=0
    #allocation4 [shape = 'u8[8192]{0}', space=vmem, size = 0x2000, scoped, tag = 'output window, operand 0, single buffered']
    #allocation5 [shape = 's32[1]{0}', space=sflag, size = 0x4, scoped, tag = 'scoped memory for tpu_custom_call.1']
    %14 = vsyncpa [#allocation5], 0
    // Predicated region
    $region2: #{tpu_custom_call.1} parent=1 // pred_check
      _
    $region3: #{tpu_custom_call.1} parent=1 // pred_check_branch
      %16 = sbr.rel (0) target = $region5
    $region4: #{tpu_custom_call.1} parent=1 // pred_region
      _
    $region5: #{tpu_custom_call.1} parent=1 // pred_fallthru
      _
    // Predicated region
    $region6: #{tpu_custom_call.1} parent=1 // pred_check
      _
    $region7: #{tpu_custom_call.1} parent=1 // pred_check_branch
      %18 = sbr.rel (0) target = $region9
    $region8: #{tpu_custom_call.1} parent=1 // pred_region
      %s19 = sld [smem:[#allocation3]]
      %p20 = scmp.lt.s32.totalorder %s19, 2
      %s21 = scalar_select %p20, %s19, 2
      %s22 = scalar_lea.vmem %s2, %s21
      %s23 = sld [smem:[#allocation3]]
    $region9: #{tpu_custom_call.1} parent=1 // pred_fallthru
      _
    // Predicated region
    $region10: #{tpu_custom_call.1} parent=1 // pred_check
      _
    $region11: #{tpu_custom_call.1} parent=1 // pred_check_branch
      %25 = sbr.rel (0) target = $region13
    $region12: #{tpu_custom_call.1} parent=1 // pred_region
      %s26 = sld [smem:[#allocation3]]
      %p27 = scmp.lt.s32.totalorder %s26, 2
      %s28 = scalar_select %p27, %s26, 2
      %s29 = scalar_lea.vmem %s3, %s28
      %s30 = sld [smem:[#allocation3]]
    $region13: #{tpu_custom_call.1} parent=1 // pred_fallthru
      _
    // Predicated region
    $region14: #{tpu_custom_call.1} parent=1 // pred_check
      _
    $region15: #{tpu_custom_call.1} parent=1 // pred_check_branch
      %32 = sbr.rel (0) target = $region17
    $region16: #{tpu_custom_call.1} parent=1 // pred_region
      %s33 = sld [smem:[#allocation3]]
      %p34 = scmp.lt.s32.totalorder %s33, 2
      %s35 = scalar_select %p34, %s33, 2
      %s36 = smul.addr %s35, 4
      %s37 = smul.addr %s36, 8
      %s38 = scalar_lea.vmem %s4, %s37
      %s39 = sld [smem:[#allocation3]]
    $region17: #{tpu_custom_call.1} parent=1 // pred_fallthru
      _
    // Predicated region
    $region18: #{tpu_custom_call.1} parent=1 // pred_check
      _
    $region19: #{tpu_custom_call.1} parent=1 // pred_check_branch
      %41 = sbr.rel (0) target = $region21
    $region20: #{tpu_custom_call.1} parent=1 // pred_region
      %s42 = sld [smem:[#allocation3]]
      %p43 = scmp.lt.s32.totalorder %s42, 2
      %s44 = scalar_select %p43, %s42, 2
      %s45 = scalar_lea.vmem %s5, %s44
      %s46 = sld [smem:[#allocation3]]
    $region21: #{tpu_custom_call.1} parent=1 // pred_fallthru
      _
    // Predicated region
    $region22: #{tpu_custom_call.1} parent=1 // pred_check
      _
    $region23: #{tpu_custom_call.1} parent=1 // pred_check_branch
      %48 = sbr.rel (0) target = $region25
    $region24: #{tpu_custom_call.1} parent=1 // pred_region
      %s49 = sld [smem:[#allocation3]]
      %p50 = scmp.lt.s32.totalorder %s49, 2
      %s51 = scalar_select %p50, %s49, 2
      %s52 = smul.addr %s51, 16
      %s53 = smul.addr %s52, 8
      %s54 = scalar_lea.vmem %s6, %s53
      %s55 = sld [smem:[#allocation3]]
    $region25: #{tpu_custom_call.1} parent=1 // pred_fallthru
      _
    // Predicated region
    $region26: #{tpu_custom_call.1} parent=1 // pred_check
      _
    $region27: #{tpu_custom_call.1} parent=1 // pred_check_branch
      %57 = sbr.rel (0) target = $region29
    $region28: #{tpu_custom_call.1} parent=1 // pred_region
      %s58 = sld [smem:[#allocation3]]
      %p59 = scmp.lt.s32.totalorder %s58, 2
      %s60 = scalar_select %p59, %s58, 2
      %s61 = scalar_lea.vmem %s7, %s60
      %s62 = sld [smem:[#allocation3]]
    $region29: #{tpu_custom_call.1} parent=1 // pred_fallthru
      _
    %s63 = sld [smem:[#allocation3]]
    %p64 = scmp.lt.s32.totalorder %s63, 2
    %s65 = scalar_select %p64, %s63, 2
    %s66 = scalar_lea.vmem %s2, %s65
    %s67 = sld [smem:[#allocation3]]
    %p68 = scmp.lt.s32.totalorder %s67, 2
    %s69 = scalar_select %p68, %s67, 2
    %s70 = scalar_lea.vmem %s3, %s69
    %s71 = sld [smem:[#allocation3]]
    %p72 = scmp.lt.s32.totalorder %s71, 2
    %s73 = scalar_select %p72, %s71, 2
    %s74 = smul.addr %s73, 4
    %s75 = smul.addr %s74, 8
    %s76 = scalar_lea.vmem %s4, %s75
    %s77 = sld [smem:[#allocation3]]
    %p78 = scmp.lt.s32.totalorder %s77, 2
    %s79 = scalar_select %p78, %s77, 2
    %s80 = scalar_lea.vmem %s5, %s79
    %s81 = sld [smem:[#allocation3]]
    %p82 = scmp.lt.s32.totalorder %s81, 2
    %s83 = scalar_select %p82, %s81, 2
    %s84 = smul.addr %s83, 16
    %s85 = smul.addr %s84, 8
    %s86 = scalar_lea.vmem %s6, %s85
    %s87 = sld [smem:[#allocation3]]
    %p88 = scmp.lt.s32.totalorder %s87, 2
    %s89 = scalar_select %p88, %s87, 2
    %s90 = scalar_lea.vmem %s7, %s89
    %s91 = sld [smem:[#allocation3]]
    %p92 = scmp.lt.s32.totalorder %s91, 2
    %s93 = scalar_select %p92, %s91, 2
    %s94 = scalar_lea.vmem %s2, %s93
    %s95 = sld [smem:[#allocation3]]
    %s96 = sld [smem:[#allocation3]]
    %p97 = scmp.lt.s32.totalorder %s96, 2
    %s98 = scalar_select %p97, %s96, 2
    %s99 = scalar_lea.vmem %s3, %s98
    %s100 = sld [smem:[#allocation3]]
    %s101 = sld [smem:[#allocation3]]
    %p102 = scmp.lt.s32.totalorder %s101, 2
    %s103 = scalar_select %p102, %s101, 2
    %s104 = smul.addr %s103, 4
    %s105 = smul.addr %s104, 8
    %s106 = scalar_lea.vmem %s4, %s105
    %s107 = sld [smem:[#allocation3]]
    %s108 = sld [smem:[#allocation3]]
    %p109 = scmp.lt.s32.totalorder %s108, 2
    %s110 = scalar_select %p109, %s108, 2
    %s111 = scalar_lea.vmem %s5, %s110
    %s112 = sld [smem:[#allocation3]]
    %s113 = sld [smem:[#allocation3]]
    %p114 = scmp.lt.s32.totalorder %s113, 2
    %s115 = scalar_select %p114, %s113, 2
    %s116 = smul.addr %s115, 16
    %s117 = smul.addr %s116, 8
    %s118 = scalar_lea.vmem %s6, %s117
    %s119 = sld [smem:[#allocation3]]
    %s120 = sld [smem:[#allocation3]]
    %p121 = scmp.lt.s32.totalorder %s120, 2
    %s122 = scalar_select %p121, %s120, 2
    %s123 = scalar_lea.vmem %s7, %s122
    %s124 = sld [smem:[#allocation3]]
    %v125 = vld [vmem:[%s1] sm:$0xff]
    %v126 = vld [vmem:[%s1 + $0x8] sm:$0xff]
    %vm127 = vcmask 261120
    %v128 = vsel %vm127, %v125, 0.0
    %129 = vadd.xlane.f32.xlu0 %v128
    %v130 = vpop.xlane.xlu0 %129
    %v131 = vsel %vm127, %v126, 0.0
    %132 = vadd.xlane.f32.xlu0 %v131
    %v133 = vpop.xlane.xlu0 %132
    %v134 = vrcp.pop 32.0
    %v135 = vmul.f32 %v130, %v134
    %v136 = vmul.f32 %v133, %v134
    %v137 = vmul.f32 %v125, %v125
    %v138 = vmul.f32 %v126, %v126
    %v139 = vsel %vm127, %v137, 0.0
    %140 = vadd.xlane.f32.xlu0 %v139
    %v141 = vpop.xlane.xlu0 %140
    %v142 = vsel %vm127, %v138, 0.0
    %143 = vadd.xlane.f32.xlu0 %v142
    %v144 = vpop.xlane.xlu0 %143
    %v145 = vmul.f32 %v141, %v134
    %v146 = vmul.f32 %v144, %v134
    %v147 = vmul.f32 %v135, %v135
    %v148 = vmul.f32 %v136, %v136
    %v149 = vsub.f32 %v145, %v147
    %v150 = vsub.f32 %v146, %v148
    %v151 = vsub.f32 %v125, %v135
    %v152 = vsub.f32 %v126, %v136
    %v153 = vadd.f32 %v149, 1e-05
    %v154 = vadd.f32 %v150, 1e-05
    %v155 = vrsqrt.pop %v153
    %v156 = vrsqrt.pop %v154
    %v157 = vmul.f32 %v151, %v155
    %v158 = vmul.f32 %v152, %v156
    %v159 = vld [vmem:[%s94] sm:$0x1]
    %v161 = vlaneseq
    %v162 = vshrl.u32 %v161, 7
    %v163 = vsub.s32 0, %v162
    %v164 = vrot.slane %v159, %v163
    %v166 = vmul.f32 %v157, %v164
    %v167 = vmul.f32 %v158, %v164
    %v168 = vld [vmem:[%s99] sm:$0x1]
    %v170 = vlaneseq
    %v171 = vshrl.u32 %v170, 7
    %v172 = vsub.s32 0, %v171
    %v173 = vrot.slane %v168, %v172
    %v175 = vadd.f32 %v166, %v173
    %v176 = vadd.f32 %v167, %v173
    %v177 = vld [vmem:[%s106] sm:$0xff]
    %v178 = vld [vmem:[%s106 + $0x8] sm:$0xff]
    %v179 = vld [vmem:[%s106 + $0x10] sm:$0xff]
    %v180 = vld [vmem:[%s106 + $0x18] sm:$0xff]
    %v181 = vld [vmem:[%s111] sm:$0x1]
    %v183 = vlaneseq
    %v184 = vshrl.u32 %v183, 7
    %v185 = vsub.s32 0, %v184
    %v186 = vrot.slane %v181, %v185
    %v189 = vsel %vm127, %v175, 0
    %v192 = vsel %vm127, %v176, 0
    %194 = vmatprep.subr.mxu0 0.0
    %195 = vmatpush1.msra.mxu0 0.0
    %196 = vmatprep.subr.mxu0 0.0
    %197 = vmatpush1.msra.mxu0 0.0
    %198 = vmatprep.subr.mxu0 0.0
    %199 = vmatpush1.msra.mxu0 0.0
    %200 = vmatprep.subr.mxu0 0.0
    %201 = vmatpush1.msra.mxu0 0.0
    %202 = vmatprep.subr.mxu0 0.0
    %203 = vmatpush1.msra.mxu0 0.0
    %204 = vmatprep.subr.mxu0 0.0
    %205 = vmatpush1.msra.mxu0 0.0
    %206 = vmatprep.subr.mxu0 0.0
    %207 = vmatpush1.msra.mxu0 0.0
    %208 = vmatprep.subr.mxu0 0.0
    %209 = vmatpush1.msra.mxu0 0.0
    %210 = vmatprep.subr.mxu0 0.0
    %211 = vmatpush1.msra.mxu0 0.0
    %212 = vmatprep.subr.mxu0 0.0
    %213 = vmatpush1.msra.mxu0 0.0
    %214 = vmatprep.subr.mxu0 0.0
    %215 = vmatpush1.msra.mxu0 0.0
    %216 = vmatprep.subr.mxu0 0.0
    %217 = vmatpush1.msra.mxu0 0.0
    %218 = vmatprep.subr.mxu0 0.0
    %219 = vmatpush1.msra.mxu0 %v180
    %220 = vmatprep.subr.mxu0 0.0
    %221 = vmatpush1.msra.mxu0 %v179
    %222 = vmatprep.subr.mxu0 0.0
    %223 = vmatpush1.msra.mxu0 %v178
    %224 = vmatprep.subr.mxu0 0.0
    %225 = vmatpush1.msra.mxu0 %v177
    %226 = vmatprep.subr.mxu0 0.0
    %227 = vmatpush2.msra.mxu0 0.0
    %228 = vmatprep.subr.mxu0 0.0
    %229 = vmatpush2.msra.mxu0 0.0
    %230 = vmatprep.subr.mxu0 0.0
    %231 = vmatpush2.msra.mxu0 0.0
    %232 = vmatprep.subr.mxu0 0.0
    %233 = vmatpush2.msra.mxu0 0.0
    %234 = vmatprep.subr.mxu0 0.0
    %235 = vmatpush2.msra.mxu0 0.0
    %236 = vmatprep.subr.mxu0 0.0
    %237 = vmatpush2.msra.mxu0 0.0
    %238 = vmatprep.subr.mxu0 0.0
    %239 = vmatpush2.msra.mxu0 0.0
    %240 = vmatprep.subr.mxu0 0.0
    %241 = vmatpush2.msra.mxu0 0.0
    %242 = vmatprep.subr.mxu0 0.0
    %243 = vmatpush2.msra.mxu0 0.0
    %244 = vmatprep.subr.mxu0 0.0
    %245 = vmatpush2.msra.mxu0 0.0
    %246 = vmatprep.subr.mxu0 0.0
    %247 = vmatpush2.msra.mxu0 0.0
    %248 = vmatprep.subr.mxu0 0.0
    %249 = vmatpush2.msra.mxu0 0.0
    %250 = vmatprep.subr.mxu0 0.0
    %251 = vmatpush2.msra.mxu0 0.0
    %252 = vmatprep.subr.mxu0 0.0
    %253 = vmatpush2.msra.mxu0 0.0
    %254 = vmatprep.subr.mxu0 0.0
    %255 = vmatpush2.msra.mxu0 0.0
    %256 = vmatprep.subr.mxu0 0.0
    %257 = vmatpush2.msra.mxu0 0.0
    %258 = vmatprep.mubr.f32.mxu0 0.0
    %259 = vmatmul.mubr.f32.gmra.mxu0 %v189
    %v260 = vpop.f32.mrf.mxu0
    %v261 = vadd.f32 %v186, %v260
    %v262 = vpop.f32.mrf.mxu0
    %263 = vmatprep.mubr.f32.mxu0 0.0
    %264 = vmatmul.mubr.f32.gmra.mxu0 %v192
    %v265 = vpop.f32.mrf.mxu0
    %v266 = vadd.f32 %v186, %v265
    %v267 = vpop.f32.mrf.mxu0
    %268 = vdwg.mxu0
    %v269 = vmax.f32 %v261, 0.0
    %v270 = vmax.f32 %v266, 0.0
    %v271 = vld [vmem:[%s118] sm:$0xff]
    %v272 = vld [vmem:[%s118 + $0x8] sm:$0xff]
    %v273 = vld [vmem:[%s118 + $0x10] sm:$0xff]
    %v274 = vld [vmem:[%s118 + $0x18] sm:$0xff]
    %v275 = vld [vmem:[%s118 + $0x20] sm:$0xff]
    %v276 = vld [vmem:[%s118 + $0x28] sm:$0xff]
    %v277 = vld [vmem:[%s118 + $0x30] sm:$0xff]
    %v278 = vld [vmem:[%s118 + $0x38] sm:$0xff]
    %v279 = vld [vmem:[%s118 + $0x40] sm:$0xff]
    %v280 = vld [vmem:[%s118 + $0x48] sm:$0xff]
    %v281 = vld [vmem:[%s118 + $0x50] sm:$0xff]
    %v282 = vld [vmem:[%s118 + $0x58] sm:$0xff]
    %v283 = vld [vmem:[%s118 + $0x60] sm:$0xff]
    %v284 = vld [vmem:[%s118 + $0x68] sm:$0xff]
    %v285 = vld [vmem:[%s118 + $0x70] sm:$0xff]
    %v286 = vld [vmem:[%s118 + $0x78] sm:$0xff]
    %v287 = vld [vmem:[%s123] sm:$0x1]
    %v289 = vlaneseq
    %v290 = vshrl.u32 %v289, 7
    %v291 = vsub.s32 0, %v290
    %v292 = vrot.slane %v287, %v291
    %294 = vmatprep.subr.mxu0 0.0
    %295 = vmatpush1.msra.mxu0 %v286
    %296 = vmatprep.subr.mxu0 0.0
    %297 = vmatpush1.msra.mxu0 %v285
    %298 = vmatprep.subr.mxu0 0.0
    %299 = vmatpush1.msra.mxu0 %v284
    %300 = vmatprep.subr.mxu0 0.0
    %301 = vmatpush1.msra.mxu0 %v283
    %302 = vmatprep.subr.mxu0 0.0
    %303 = vmatpush1.msra.mxu0 %v282
    %304 = vmatprep.subr.mxu0 0.0
    %305 = vmatpush1.msra.mxu0 %v281
    %306 = vmatprep.subr.mxu0 0.0
    %307 = vmatpush1.msra.mxu0 %v280
    %308 = vmatprep.subr.mxu0 0.0
    %309 = vmatpush1.msra.mxu0 %v279
    %310 = vmatprep.subr.mxu0 0.0
    %311 = vmatpush1.msra.mxu0 %v278
    %312 = vmatprep.subr.mxu0 0.0
    %313 = vmatpush1.msra.mxu0 %v277
    %314 = vmatprep.subr.mxu0 0.0
    %315 = vmatpush1.msra.mxu0 %v276
    %316 = vmatprep.subr.mxu0 0.0
    %317 = vmatpush1.msra.mxu0 %v275
    %318 = vmatprep.subr.mxu0 0.0
    %319 = vmatpush1.msra.mxu0 %v274
    %320 = vmatprep.subr.mxu0 0.0
    %321 = vmatpush1.msra.mxu0 %v273
    %322 = vmatprep.subr.mxu0 0.0
    %323 = vmatpush1.msra.mxu0 %v272
    %324 = vmatprep.subr.mxu0 0.0
    %325 = vmatpush1.msra.mxu0 %v271
    %326 = vmatprep.subr.mxu0 0.0
    %327 = vmatpush2.msra.mxu0 0.0
    %328 = vmatprep.subr.mxu0 0.0
    %329 = vmatpush2.msra.mxu0 0.0
    %330 = vmatprep.subr.mxu0 0.0
    %331 = vmatpush2.msra.mxu0 0.0
    %332 = vmatprep.subr.mxu0 0.0
    %333 = vmatpush2.msra.mxu0 0.0
    %334 = vmatprep.subr.mxu0 0.0
    %335 = vmatpush2.msra.mxu0 0.0
    %336 = vmatprep.subr.mxu0 0.0
    %337 = vmatpush2.msra.mxu0 0.0
    %338 = vmatprep.subr.mxu0 0.0
    %339 = vmatpush2.msra.mxu0 0.0
    %340 = vmatprep.subr.mxu0 0.0
    %341 = vmatpush2.msra.mxu0 0.0
    %342 = vmatprep.subr.mxu0 0.0
    %343 = vmatpush2.msra.mxu0 0.0
    %344 = vmatprep.subr.mxu0 0.0
    %345 = vmatpush2.msra.mxu0 0.0
    %346 = vmatprep.subr.mxu0 0.0
    %347 = vmatpush2.msra.mxu0 0.0
    %348 = vmatprep.subr.mxu0 0.0
    %349 = vmatpush2.msra.mxu0 0.0
    %350 = vmatprep.subr.mxu0 0.0
    %351 = vmatpush2.msra.mxu0 0.0
    %352 = vmatprep.subr.mxu0 0.0
    %353 = vmatpush2.msra.mxu0 0.0
    %354 = vmatprep.subr.mxu0 0.0
    %355 = vmatpush2.msra.mxu0 0.0
    %356 = vmatprep.subr.mxu0 0.0
    %357 = vmatpush2.msra.mxu0 0.0
    %358 = vmatprep.mubr.f32.mxu0 0.0
    %359 = vmatmul.mubr.f32.gmra.mxu0 %v269
    %v360 = vpop.f32.mrf.mxu0
    %v361 = vadd.f32 %v292, %v360
    %v362 = vpop.f32.mrf.mxu0
    %363 = vmatprep.mubr.f32.mxu0 0.0
    %364 = vmatmul.mubr.f32.gmra.mxu0 %v270
    %v365 = vpop.f32.mrf.mxu0
    %v366 = vadd.f32 %v292, %v365
    %v367 = vpop.f32.mrf.mxu0
    %368 = vdwg.mxu0
    %v369 = vadd.f32 %v361, %v125
    %v370 = vadd.f32 %v366, %v126
    %371 = vst.msk [vmem:[#allocation4] sm:$0xff] %vm127, %v369
    %372 = vst.msk [vmem:[#allocation4 + $0x8] sm:$0xff] %vm127, %v370
    // Predicated region
    $region30: #{tpu_custom_call.1} parent=1 // pred_check
      _
    $region31: #{tpu_custom_call.1} parent=1 // pred_check_branch
      %374 = sbr.rel (0) target = $region33
    $region32: #{tpu_custom_call.1} parent=1 // pred_region
      %s376 = ssub.s32 256, 256
      %377 = vsyncadd [#allocation5], %s376
      %s378 = sshll.u32 [#allocation4], 4
      %s379 = int_to_ptr.vmem [resolvable:$true] %s378
      %384 = dma.vmem_to_hbm [thread:$0]  %s379, 256, %s8, [#allocation5], 128, 128, 8
    $region33: #{tpu_custom_call.1} parent=1 // pred_fallthru
      _
    // Predicated region
    $region34: #{tpu_custom_call.1} parent=1 // pred_check
      _
    $region35: #{tpu_custom_call.1} parent=1 // pred_check_branch
      %386 = sbr.rel (0) target = $region37
    $region36: #{tpu_custom_call.1} parent=1 // pred_region
      %387 = dma.done [#allocation5], 256
    $region37: #{tpu_custom_call.1} parent=1 // pred_fallthru
      _
    %388 = vsyncpa [#allocation5], 1

</llo_original>
